<compile_context>
chip_gen: v5e
topology: v5e:2x2
jax: 0.10.0
libtpu: 0.0.40
codegen_flags: <defaults>
</compile_context>

<pallas_src>
import math

import jax
import jax.numpy as jnp
from jax.experimental import pallas as pl
from jax.experimental.pallas import tpu as pltpu


# ---------------------------------------------------------------------------
# Kernel factory: one grid step processes `block_b` batch elements.
# ---------------------------------------------------------------------------
def _make_kernel(block_b, num_heads, head_dim, tgt_len, embed_dim, eps,
                 need_weights):
    Bb, H, Dh, T, E = block_b, num_heads, head_dim, tgt_len, embed_dim
    BH = Bb * H
    inv_e = 1.0 / E
    inv_h = 1.0 / H

    def kernel(x_ref, bias_ref, wqkv_ref, bqv_ref, wo_ref, ln_ref, bo_ref,
               out_ref, *attnw_refs):
        # ---- inputs ------------------------------------------------------
        x = x_ref[...]                                      # (Bb, T, E) bf16
        # replicate tokens across heads: (Bb*H, T, E), batch index = b*H + h
        x_bh = jnp.broadcast_to(x[:, None], (Bb, H, T, E)).reshape(BH, T, E)

        def bh_w(w):                                        # (H, a, b) -> (BH, a, b)
            return jnp.broadcast_to(w[None], (Bb,) + w.shape).reshape(
                (BH,) + w.shape[1:])

        dn_bmm = (((2,), (1,)), ((0,), (0,)))               # bmk,bkn->bmn

        # ---- per-head QKV projections (bf16 MXU, f32 accumulate) ----------
        q = jax.lax.dot_general(x_bh, bh_w(wqkv_ref[0]), dn_bmm,
                                preferred_element_type=jnp.float32)
        k = jax.lax.dot_general(x_bh, bh_w(wqkv_ref[1]), dn_bmm,
                                preferred_element_type=jnp.float32)
        v = jax.lax.dot_general(x_bh, bh_w(wqkv_ref[2]), dn_bmm,
                                preferred_element_type=jnp.float32)
        q = q + bh_w(bqv_ref[0])        # scaling already folded into wq / bq
        v = v + bh_w(bqv_ref[1])

        # ---- scores + softmax (f32) ---------------------------------------
        s = jax.lax.dot_general(q.astype(jnp.bfloat16), k.astype(jnp.bfloat16),
                                (((2,), (2,)), ((0,), (0,))),
                                preferred_element_type=jnp.float32)  # (BH,T,S)
        s = s + bias_ref[...].reshape(BH, T, T)
        s = s - jnp.max(s, axis=-1, keepdims=True)
        e = jnp.exp(s)
        p = e * pl.reciprocal(jnp.sum(e, axis=-1, keepdims=True), approx=True)

        if need_weights:                                    # head-mean map
            attnw_refs[0][...] = jnp.sum(p.reshape(Bb, H, T, T), axis=1) * inv_h

        # ---- P @ V ---------------------------------------------------------
        o = jax.lax.dot_general(p.astype(jnp.bfloat16), v.astype(jnp.bfloat16),
                                dn_bmm,
                                preferred_element_type=jnp.float32)  # (BH,T,Dh)

        # ---- LayerNorm over the full embedding dim (all heads) -------------
        o4 = o.reshape(Bb, H, T, Dh)
        mu = jnp.sum(jnp.sum(o4, axis=3, keepdims=True),
                     axis=1, keepdims=True) * inv_e          # (Bb,1,T,1)
        d = o4 - mu
        var = jnp.sum(jnp.sum(d * d, axis=3, keepdims=True),
                      axis=1, keepdims=True) * inv_e
        o4 = d * jax.lax.rsqrt(var + eps)
        o4 = o4 * ln_ref[0][None] + ln_ref[1][None]          # (1,H,1,Dh) affine

        # ---- out_proj: sum_h o[:, h] @ Wo[h] + bo ---------------------------
        oc = jax.lax.dot_general(o4.reshape(BH, T, Dh).astype(jnp.bfloat16),
                                 bh_w(wo_ref[...]), dn_bmm,
                                 preferred_element_type=jnp.float32)  # (BH,T,E)
        out_ref[...] = jnp.sum(oc.reshape(Bb, H, T, E), axis=1) + bo_ref[...]

    return kernel


# ---------------------------------------------------------------------------
# Wrapper
# ---------------------------------------------------------------------------
def multihead_attention(query, attn_bias, params, *, num_heads, d_tilde=1,
                        block_b=1, need_weights=True):
    """query: (tgt_len, bsz, embed_dim); attn_bias: (bsz, num_heads, tgt, src).

    Returns (attn, attn_weights) matching the torch module (eval, dropout=0):
      attn:         (tgt_len, bsz, embed_dim)  float32
      attn_weights: (bsz, tgt_len, src_len) float32, or None if not requested.
    """
    T, B, E = query.shape
    H = num_heads
    Dh = E // H
    assert Dh * H == E
    if B % block_b != 0:
        block_b = 1
    scaling = (Dh / d_tilde) ** 0.5 / Dh

    # (T, B, E) -> (B, T, E); bf16 activations for the MXU.
    x = jnp.transpose(query, (1, 0, 2)).astype(jnp.bfloat16)
    bias = attn_bias.astype(jnp.float32)

    # torch Linear stores W as (out, in).  Pre-transpose to (in, out), split
    # the out dim per head -> (H, E, Dh), fold the attention scaling into the
    # q projection.  out_proj is split along its *input* dim -> (H, Dh, E).
    def split_heads_out(w_t):                    # (E_in, E_out) -> (H, E_in, Dh)
        return jnp.transpose(w_t.reshape(E, H, Dh), (1, 0, 2))

    wq_h = split_heads_out(params["wq"].T * scaling)
    wk_h = split_heads_out(params["wk"].T)
    wv_h = split_heads_out(params["wv"].T)
    wqkv = jnp.stack([wq_h, wk_h, wv_h]).astype(jnp.bfloat16)      # (3,H,E,Dh)
    wo_h = params["wo"].T.reshape(H, Dh, E).astype(jnp.bfloat16)   # (H,Dh,E)
    bqv = jnp.stack([(params["bq"] * scaling).reshape(H, 1, Dh),
                     params["bv"].reshape(H, 1, Dh)]
                    ).astype(jnp.float32)                          # (2,H,1,Dh)
    ln = jnp.stack([params["ln_w"].reshape(H, 1, Dh),
                    params["ln_b"].reshape(H, 1, Dh)]
                   ).astype(jnp.float32)                           # (2,H,1,Dh)
    bo = params["bo"].reshape(1, 1, E).astype(jnp.float32)         # (1,1,E)

    kernel = _make_kernel(block_b, H, Dh, T, E, 1e-5, need_weights)

    out_block = pl.BlockSpec((block_b, T, E), lambda i: (i, 0, 0))
    if need_weights:
        out_shape = (jax.ShapeDtypeStruct((B, T, E), jnp.float32),
                     jax.ShapeDtypeStruct((B, T, T), jnp.float32))
        out_specs = (out_block,
                     pl.BlockSpec((block_b, T, T), lambda i: (i, 0, 0)))
    else:
        out_shape = (jax.ShapeDtypeStruct((B, T, E), jnp.float32),)
        out_specs = (out_block,)

    full = lambda a: pl.BlockSpec(a.shape, lambda i: (0,) * a.ndim)

    grid_spec = pltpu.PrefetchScalarGridSpec(
        num_scalar_prefetch=0,
        grid=(B // block_b,),
        in_specs=[
            pl.BlockSpec((block_b, T, E), lambda i: (i, 0, 0)),        # x
            pl.BlockSpec((block_b, H, T, T), lambda i: (i, 0, 0, 0)),  # bias
            full(wqkv), full(bqv), full(wo_h), full(ln), full(bo),
        ],
        out_specs=out_specs,
    )

    results = pl.pallas_call(
        kernel,
        out_shape=out_shape,
        grid_spec=grid_spec,
        compiler_params=pltpu.CompilerParams(
            dimension_semantics=("parallel",),
            vmem_limit_bytes=48 * 1024 * 1024,   # explicit budget with headroom
        ),
    )(x, bias, wqkv, bqv, wo_h, ln, bo)

    if need_weights:
        out, attnw = results
    else:
        out, attnw = results[0], None
    attn = jnp.transpose(out, (1, 0, 2))          # back to (T, B, E)
    return attn, attnw


# ---------------------------------------------------------------------------
# Deterministic parameter init (mirrors reset_parameters with d_tilde=1)
# ---------------------------------------------------------------------------
def xavier_uniform(key, shape, gain):
    fan_out, fan_in = shape
    bound = gain * math.sqrt(6.0 / (fan_in + fan_out))
    return jax.random.uniform(key, shape, jnp.float32, -bound, bound)


def init_params(key, embed_dim):
    E = embed_dim
    ks = jax.random.split(key, 8)
    gq = 1.0 / math.sqrt(2.0)   # qkv_same_dim, d_tilde=1
    linear_b = 1.0 / math.sqrt(E)
    return dict(
        # Linear weights are (out_features, in_features), as in torch.
        wq=xavier_uniform(ks[0], (E, E), gq),
        bq=jax.random.uniform(ks[1], (E,), jnp.float32, -linear_b, linear_b),
        wk=xavier_uniform(ks[2], (E, E), gq),          # k_proj: bias=False
        wv=xavier_uniform(ks[3], (E, E), gq),
        bv=jax.random.uniform(ks[4], (E,), jnp.float32, -linear_b, linear_b),
        wo=xavier_uniform(ks[5], (E, E), 1.0),
        bo=jnp.zeros((E,), jnp.float32),               # out_proj bias reset to 0
        ln_w=jnp.ones((E,), jnp.float32),
        ln_b=jnp.zeros((E,), jnp.float32),
    )


# ---------------------------------------------------------------------------
# Pure-JAX f32 reference for correctness check
# ---------------------------------------------------------------------------
def reference(query, attn_bias, params, *, num_heads, d_tilde=1):
    T, B, E = query.shape
    H, Dh = num_heads, E // num_heads
    scaling = (Dh / d_tilde) ** 0.5 / Dh
    p = params
    q = (query @ p["wq"].T + p["bq"]) * scaling
    k = query @ p["wk"].T
    v = query @ p["wv"].T + p["bv"]
    to_h = lambda t: jnp.transpose(t.reshape(T, B * H, Dh), (1, 0, 2))
    qh, kh, vh = to_h(q), to_h(k), to_h(v)
    w = jnp.einsum("btd,bsd->bts", qh, kh) + attn_bias.reshape(B * H, T, T)
    w = jax.nn.softmax(w, axis=-1)
    attn = jnp.einsum("bts,bsd->btd", w, vh)
    attn = jnp.transpose(attn, (1, 0, 2)).reshape(T, B, E)
    mu = attn.mean(-1, keepdims=True)
    var = ((attn - mu) ** 2).mean(-1, keepdims=True)
    attn = (attn - mu) / jnp.sqrt(var + 1e-5) * p["ln_w"] + p["ln_b"]
    attn = attn @ p["wo"].T + p["bo"]
    attnw = w.reshape(B, H, T, T).mean(axis=1)
    return attn, attnw


if __name__ == "__main__":
    embed_dim, num_heads = 32, 4
    tgt_len, bsz = 8, 2

    root = jax.random.PRNGKey(0)
    k_param, k_q, k_b = jax.random.split(root, 3)
    params = init_params(k_param, embed_dim)

    query = jax.random.normal(k_q, (tgt_len, bsz, embed_dim), jnp.float32)
    attn_bias = 0.1 * jax.random.normal(
        k_b, (bsz, num_heads, tgt_len, tgt_len), jnp.float32)

    ref_attn, ref_w = reference(query, attn_bias, params, num_heads=num_heads)

    # bf16 MXU matmuls -> tolerances loosened vs. the pure-f32 reference.
    for bb in (1, 2):
        attn, attn_w = multihead_attention(query, attn_bias, params,
                                           num_heads=num_heads, block_b=bb)
        jax.block_until_ready((attn, attn_w))
        assert attn.shape == (tgt_len, bsz, embed_dim)
        assert attn_w.shape == (bsz, tgt_len, tgt_len)
        assert jnp.allclose(attn, ref_attn, atol=5e-2, rtol=5e-2), (
            f"attn mismatch (block_b={bb})")
        assert jnp.allclose(attn_w, ref_w, atol=1.5e-2, rtol=1.5e-2), (
            f"attn_weights mismatch (block_b={bb})")

    # need_weights=False path: skips the (B,T,T) writeback entirely.
    attn_nw, none_w = multihead_attention(query, attn_bias, params,
                                          num_heads=num_heads, block_b=2,
                                          need_weights=False)
    jax.block_until_ready(attn_nw)
    assert none_w is None
    assert jnp.allclose(attn_nw, ref_attn, atol=5e-2, rtol=5e-2)

    print("KERNEL_OK")
</pallas_src>

<mosaic_0001>
module attributes {stable_mosaic.version = 11 : i64} {
  func.func @kernel(%arg0: i32, %arg1: memref<1x8x32xbf16, #tpu.memory_space<vmem>>, %arg2: memref<1x4x8x8xf32, #tpu.memory_space<vmem>>, %arg3: memref<3x4x32x8xbf16, #tpu.memory_space<vmem>>, %arg4: memref<2x4x1x8xf32, #tpu.memory_space<vmem>>, %arg5: memref<4x8x32xbf16, #tpu.memory_space<vmem>>, %arg6: memref<2x4x1x8xf32, #tpu.memory_space<vmem>>, %arg7: memref<1x1x32xf32, #tpu.memory_space<vmem>>, %arg8: memref<1x8x32xf32, #tpu.memory_space<vmem>>, %arg9: memref<1x8x8xf32, #tpu.memory_space<vmem>>) attributes {dimension_semantics = [#tpu.dimension_semantics<parallel>], iteration_bounds = array<i64: 2>, scalar_prefetch = 0 : i64, scratch_operands = 0 : i64, tpu.core_type = #tpu.core_type<tc>, window_params = [{transform_indices = @transform_0, window_bounds = array<i64: 1, 8, 32>}, {transform_indices = @transform_1, window_bounds = array<i64: 1, 4, 8, 8>}, {pipeline_mode = #tpu.pipeline_mode<synchronous>, transform_indices = @transform_2, window_bounds = array<i64: 3, 4, 32, 8>}, {pipeline_mode = #tpu.pipeline_mode<synchronous>, transform_indices = @transform_3, window_bounds = array<i64: 2, 4, 1, 8>}, {pipeline_mode = #tpu.pipeline_mode<synchronous>, transform_indices = @transform_4, window_bounds = array<i64: 4, 8, 32>}, {pipeline_mode = #tpu.pipeline_mode<synchronous>, transform_indices = @transform_5, window_bounds = array<i64: 2, 4, 1, 8>}, {pipeline_mode = #tpu.pipeline_mode<synchronous>, transform_indices = @transform_6, window_bounds = array<i64: 1, 1, 32>}, {transform_indices = @transform_7, window_bounds = array<i64: 1, 8, 32>}, {transform_indices = @transform_8, window_bounds = array<i64: 1, 8, 8>}]} {
    %c0 = arith.constant 0 : index
    %c0_0 = arith.constant 0 : index
    %c0_1 = arith.constant 0 : index
    %0 = vector.load %arg1[%c0, %c0_0, %c0_1] : memref<1x8x32xbf16, #tpu.memory_space<vmem>>, vector<1x8x32xbf16>
    %1 = vector.shape_cast %0 : vector<1x8x32xbf16> to vector<1x1x8x32xbf16>
    %2 = vector.shape_cast %1 : vector<1x1x8x32xbf16> to vector<1x1x8x32xbf16>
    %3 = vector.broadcast %2 : vector<1x1x8x32xbf16> to vector<1x4x8x32xbf16>
    %4 = vector.shape_cast %3 : vector<1x4x8x32xbf16> to vector<4x8x32xbf16>
    %c0_2 = arith.constant 0 : index
    %c0_3 = arith.constant 0 : index
    %c0_4 = arith.constant 0 : index
    %c0_5 = arith.constant 0 : index
    %5 = vector.load %arg3[%c0_2, %c0_3, %c0_4, %c0_5] : memref<3x4x32x8xbf16, #tpu.memory_space<vmem>>, vector<1x4x32x8xbf16>
    %6 = vector.shape_cast %5 : vector<1x4x32x8xbf16> to vector<4x32x8xbf16>
    %7 = vector.shape_cast %6 : vector<4x32x8xbf16> to vector<1x4x32x8xbf16>
    %8 = vector.shape_cast %7 : vector<1x4x32x8xbf16> to vector<4x32x8xbf16>
    %cst = arith.constant dense<0.000000e+00> : vector<4x8x8xf32>
    %9 = tpu.matmul %4, %8, %cst {dimension_numbers = #tpu.dot_dimension_numbers<[2], [1], [1], [2], [0, 0, 0, 1, 1, 2], [0], [0]>} : vector<4x8x32xbf16>, vector<4x32x8xbf16>, vector<4x8x8xf32> -> vector<4x8x8xf32>
    %c1 = arith.constant 1 : index
    %c0_6 = arith.constant 0 : index
    %c0_7 = arith.constant 0 : index
    %c0_8 = arith.constant 0 : index
    %10 = vector.load %arg3[%c1, %c0_6, %c0_7, %c0_8] : memref<3x4x32x8xbf16, #tpu.memory_space<vmem>>, vector<1x4x32x8xbf16>
    %11 = vector.shape_cast %10 : vector<1x4x32x8xbf16> to vector<4x32x8xbf16>
    %12 = vector.shape_cast %11 : vector<4x32x8xbf16> to vector<1x4x32x8xbf16>
    %13 = vector.shape_cast %12 : vector<1x4x32x8xbf16> to vector<4x32x8xbf16>
    %cst_9 = arith.constant dense<0.000000e+00> : vector<4x8x8xf32>
    %14 = tpu.matmul %4, %13, %cst_9 {dimension_numbers = #tpu.dot_dimension_numbers<[2], [1], [1], [2], [0, 0, 0, 1, 1, 2], [0], [0]>} : vector<4x8x32xbf16>, vector<4x32x8xbf16>, vector<4x8x8xf32> -> vector<4x8x8xf32>
    %c2 = arith.constant 2 : index
    %c0_10 = arith.constant 0 : index
    %c0_11 = arith.constant 0 : index
    %c0_12 = arith.constant 0 : index
    %15 = vector.load %arg3[%c2, %c0_10, %c0_11, %c0_12] : memref<3x4x32x8xbf16, #tpu.memory_space<vmem>>, vector<1x4x32x8xbf16>
    %16 = vector.shape_cast %15 : vector<1x4x32x8xbf16> to vector<4x32x8xbf16>
    %17 = vector.shape_cast %16 : vector<4x32x8xbf16> to vector<1x4x32x8xbf16>
    %18 = vector.shape_cast %17 : vector<1x4x32x8xbf16> to vector<4x32x8xbf16>
    %cst_13 = arith.constant dense<0.000000e+00> : vector<4x8x8xf32>
    %19 = tpu.matmul %4, %18, %cst_13 {dimension_numbers = #tpu.dot_dimension_numbers<[2], [1], [1], [2], [0, 0, 0, 1, 1, 2], [0], [0]>} : vector<4x8x32xbf16>, vector<4x32x8xbf16>, vector<4x8x8xf32> -> vector<4x8x8xf32>
    %c0_14 = arith.constant 0 : index
    %c0_15 = arith.constant 0 : index
    %c0_16 = arith.constant 0 : index
    %c0_17 = arith.constant 0 : index
    %20 = vector.load %arg4[%c0_14, %c0_15, %c0_16, %c0_17] : memref<2x4x1x8xf32, #tpu.memory_space<vmem>>, vector<1x4x1x8xf32>
    %21 = vector.shape_cast %20 : vector<1x4x1x8xf32> to vector<4x1x8xf32>
    %22 = vector.shape_cast %21 : vector<4x1x8xf32> to vector<1x4x1x8xf32>
    %23 = vector.shape_cast %22 : vector<1x4x1x8xf32> to vector<4x1x8xf32>
    %24 = vector.broadcast %23 : vector<4x1x8xf32> to vector<4x8x8xf32>
    %25 = arith.addf %9, %24 : vector<4x8x8xf32>
    %c1_18 = arith.constant 1 : index
    %c0_19 = arith.constant 0 : index
    %c0_20 = arith.constant 0 : index
    %c0_21 = arith.constant 0 : index
    %26 = vector.load %arg4[%c1_18, %c0_19, %c0_20, %c0_21] : memref<2x4x1x8xf32, #tpu.memory_space<vmem>>, vector<1x4x1x8xf32>
    %27 = vector.shape_cast %26 : vector<1x4x1x8xf32> to vector<4x1x8xf32>
    %28 = vector.shape_cast %27 : vector<4x1x8xf32> to vector<1x4x1x8xf32>
    %29 = vector.shape_cast %28 : vector<1x4x1x8xf32> to vector<4x1x8xf32>
    %30 = vector.broadcast %29 : vector<4x1x8xf32> to vector<4x8x8xf32>
    %31 = arith.addf %19, %30 : vector<4x8x8xf32>
    %32 = arith.truncf %25 : vector<4x8x8xf32> to vector<4x8x8xbf16>
    %33 = arith.truncf %14 : vector<4x8x8xf32> to vector<4x8x8xbf16>
    %cst_22 = arith.constant dense<0.000000e+00> : vector<4x8x8xf32>
    %34 = tpu.matmul %32, %33, %cst_22 {dimension_numbers = #tpu.dot_dimension_numbers<[2], [2], [1], [1], [0, 0, 0, 1, 1, 1], [0], [0]>} : vector<4x8x8xbf16>, vector<4x8x8xbf16>, vector<4x8x8xf32> -> vector<4x8x8xf32>
    %c0_23 = arith.constant 0 : index
    %c0_24 = arith.constant 0 : index
    %c0_25 = arith.constant 0 : index
    %c0_26 = arith.constant 0 : index
    %35 = vector.load %arg2[%c0_23, %c0_24, %c0_25, %c0_26] : memref<1x4x8x8xf32, #tpu.memory_space<vmem>>, vector<1x4x8x8xf32>
    %36 = vector.shape_cast %35 : vector<1x4x8x8xf32> to vector<4x8x8xf32>
    %37 = arith.addf %34, %36 : vector<4x8x8xf32>
    %cst_27 = arith.constant dense<0xFF800000> : vector<4x8xf32>
    %38 = vector.multi_reduction <maximumf>, %37, %cst_27 [2] : vector<4x8x8xf32> to vector<4x8xf32>
    %39 = vector.shape_cast %38 : vector<4x8xf32> to vector<4x8x1xf32>
    %40 = vector.broadcast %39 : vector<4x8x1xf32> to vector<4x8x8xf32>
    %41 = arith.subf %37, %40 : vector<4x8x8xf32>
    %42 = math.exp %41 : vector<4x8x8xf32>
    %cst_28 = arith.constant dense<0.000000e+00> : vector<4x8xf32>
    %43 = vector.multi_reduction <add>, %42, %cst_28 [2] : vector<4x8x8xf32> to vector<4x8xf32>
    %44 = vector.shape_cast %43 : vector<4x8xf32> to vector<4x8x1xf32>
    %45 = tpu.reciprocal %44 {approx = true} : vector<4x8x1xf32> -> vector<4x8x1xf32>
    %46 = vector.broadcast %45 : vector<4x8x1xf32> to vector<4x8x8xf32>
    %47 = arith.mulf %42, %46 : vector<4x8x8xf32>
    %48 = vector.shape_cast %47 : vector<4x8x8xf32> to vector<1x4x8x8xf32>
    %cst_29 = arith.constant dense<0.000000e+00> : vector<1x8x8xf32>
    %49 = vector.multi_reduction <add>, %48, %cst_29 [1] : vector<1x4x8x8xf32> to vector<1x8x8xf32>
    %cst_30 = arith.constant 2.500000e-01 : f32
    %50 = vector.broadcast %cst_30 : f32 to vector<1x8x8xf32>
    %51 = arith.mulf %49, %50 : vector<1x8x8xf32>
    %c0_31 = arith.constant 0 : index
    %c0_32 = arith.constant 0 : index
    %c0_33 = arith.constant 0 : index
    %52 = vector.load %arg9[%c0_31, %c0_32, %c0_33] : memref<1x8x8xf32, #tpu.memory_space<vmem>>, vector<1x8x8xf32>
    tpu.vector_store %arg9[%c0_31, %c0_32, %c0_33], %51 {strides = array<i32>} : memref<1x8x8xf32, #tpu.memory_space<vmem>>, vector<1x8x8xf32>,
    %53 = arith.truncf %47 : vector<4x8x8xf32> to vector<4x8x8xbf16>
    %54 = arith.truncf %31 : vector<4x8x8xf32> to vector<4x8x8xbf16>
    %cst_34 = arith.constant dense<0.000000e+00> : vector<4x8x8xf32>
    %55 = tpu.matmul %53, %54, %cst_34 {dimension_numbers = #tpu.dot_dimension_numbers<[2], [1], [1], [2], [0, 0, 0, 1, 1, 2], [0], [0]>} : vector<4x8x8xbf16>, vector<4x8x8xbf16>, vector<4x8x8xf32> -> vector<4x8x8xf32>
    %56 = vector.shape_cast %55 : vector<4x8x8xf32> to vector<1x4x8x8xf32>
    %cst_35 = arith.constant dense<0.000000e+00> : vector<1x4x8xf32>
    %57 = vector.multi_reduction <add>, %56, %cst_35 [3] : vector<1x4x8x8xf32> to vector<1x4x8xf32>
    %58 = vector.shape_cast %57 : vector<1x4x8xf32> to vector<1x4x8x1xf32>
    %cst_36 = arith.constant dense<0.000000e+00> : vector<1x8x1xf32>
    %59 = vector.multi_reduction <add>, %58, %cst_36 [1] : vector<1x4x8x1xf32> to vector<1x8x1xf32>
    %60 = vector.shape_cast %59 : vector<1x8x1xf32> to vector<1x1x8x1xf32>
    %cst_37 = arith.constant 3.125000e-02 : f32
    %61 = vector.broadcast %cst_37 : f32 to vector<1x1x8x1xf32>
    %62 = arith.mulf %60, %61 : vector<1x1x8x1xf32>
    %63 = vector.broadcast %62 : vector<1x1x8x1xf32> to vector<1x4x8x8xf32>
    %64 = arith.subf %56, %63 : vector<1x4x8x8xf32>
    %65 = arith.mulf %64, %64 : vector<1x4x8x8xf32>
    %cst_38 = arith.constant dense<0.000000e+00> : vector<1x4x8xf32>
    %66 = vector.multi_reduction <add>, %65, %cst_38 [3] : vector<1x4x8x8xf32> to vector<1x4x8xf32>
    %67 = vector.shape_cast %66 : vector<1x4x8xf32> to vector<1x4x8x1xf32>
    %cst_39 = arith.constant dense<0.000000e+00> : vector<1x8x1xf32>
    %68 = vector.multi_reduction <add>, %67, %cst_39 [1] : vector<1x4x8x1xf32> to vector<1x8x1xf32>
    %69 = vector.shape_cast %68 : vector<1x8x1xf32> to vector<1x1x8x1xf32>
    %cst_40 = arith.constant 3.125000e-02 : f32
    %70 = vector.broadcast %cst_40 : f32 to vector<1x1x8x1xf32>
    %71 = arith.mulf %69, %70 : vector<1x1x8x1xf32>
    %cst_41 = arith.constant 9.99999974E-6 : f32
    %72 = vector.broadcast %cst_41 : f32 to vector<1x1x8x1xf32>
    %73 = arith.addf %71, %72 : vector<1x1x8x1xf32>
    %74 = math.rsqrt %73 : vector<1x1x8x1xf32>
    %75 = vector.broadcast %74 : vector<1x1x8x1xf32> to vector<1x4x8x8xf32>
    %76 = arith.mulf %64, %75 : vector<1x4x8x8xf32>
    %c0_42 = arith.constant 0 : index
    %c0_43 = arith.constant 0 : index
    %c0_44 = arith.constant 0 : index
    %c0_45 = arith.constant 0 : index
    %77 = vector.load %arg6[%c0_42, %c0_43, %c0_44, %c0_45] : memref<2x4x1x8xf32, #tpu.memory_space<vmem>>, vector<1x4x1x8xf32>
    %78 = vector.shape_cast %77 : vector<1x4x1x8xf32> to vector<4x1x8xf32>
    %79 = vector.shape_cast %78 : vector<4x1x8xf32> to vector<1x4x1x8xf32>
    %80 = vector.broadcast %79 : vector<1x4x1x8xf32> to vector<1x4x8x8xf32>
    %81 = arith.mulf %76, %80 : vector<1x4x8x8xf32>
    %c1_46 = arith.constant 1 : index
    %c0_47 = arith.constant 0 : index
    %c0_48 = arith.constant 0 : index
    %c0_49 = arith.constant 0 : index
    %82 = vector.load %arg6[%c1_46, %c0_47, %c0_48, %c0_49] : memref<2x4x1x8xf32, #tpu.memory_space<vmem>>, vector<1x4x1x8xf32>
    %83 = vector.shape_cast %82 : vector<1x4x1x8xf32> to vector<4x1x8xf32>
    %84 = vector.shape_cast %83 : vector<4x1x8xf32> to vector<1x4x1x8xf32>
    %85 = vector.broadcast %84 : vector<1x4x1x8xf32> to vector<1x4x8x8xf32>
    %86 = arith.addf %81, %85 : vector<1x4x8x8xf32>
    %87 = vector.shape_cast %86 : vector<1x4x8x8xf32> to vector<4x8x8xf32>
    %88 = arith.truncf %87 : vector<4x8x8xf32> to vector<4x8x8xbf16>
    %c0_50 = arith.constant 0 : index
    %c0_51 = arith.constant 0 : index
    %c0_52 = arith.constant 0 : index
    %89 = vector.load %arg5[%c0_50, %c0_51, %c0_52] : memref<4x8x32xbf16, #tpu.memory_space<vmem>>, vector<4x8x32xbf16>
    %90 = vector.shape_cast %89 : vector<4x8x32xbf16> to vector<1x4x8x32xbf16>
    %91 = vector.shape_cast %90 : vector<1x4x8x32xbf16> to vector<4x8x32xbf16>
    %cst_53 = arith.constant dense<0.000000e+00> : vector<4x8x32xf32>
    %92 = tpu.matmul %88, %91, %cst_53 {dimension_numbers = #tpu.dot_dimension_numbers<[2], [1], [1], [2], [0, 0, 0, 1, 1, 2], [0], [0]>} : vector<4x8x8xbf16>, vector<4x8x32xbf16>, vector<4x8x32xf32> -> vector<4x8x32xf32>
    %93 = vector.shape_cast %92 : vector<4x8x32xf32> to vector<1x4x8x32xf32>
    %cst_54 = arith.constant dense<0.000000e+00> : vector<1x8x32xf32>
    %94 = vector.multi_reduction <add>, %93, %cst_54 [1] : vector<1x4x8x32xf32> to vector<1x8x32xf32>
    %c0_55 = arith.constant 0 : index
    %c0_56 = arith.constant 0 : index
    %c0_57 = arith.constant 0 : index
    %95 = vector.load %arg7[%c0_55, %c0_56, %c0_57] : memref<1x1x32xf32, #tpu.memory_space<vmem>>, vector<1x1x32xf32>
    %96 = vector.broadcast %95 : vector<1x1x32xf32> to vector<1x8x32xf32>
    %97 = arith.addf %94, %96 : vector<1x8x32xf32>
    %c0_58 = arith.constant 0 : index
    %c0_59 = arith.constant 0 : index
    %c0_60 = arith.constant 0 : index
    %98 = vector.load %arg8[%c0_58, %c0_59, %c0_60] : memref<1x8x32xf32, #tpu.memory_space<vmem>>, vector<1x8x32xf32>
    tpu.vector_store %arg8[%c0_58, %c0_59, %c0_60], %97 {strides = array<i32>} : memref<1x8x32xf32, #tpu.memory_space<vmem>>, vector<1x8x32xf32>,
    return
  }
  func.func @transform_0(%arg0: i32) -> (i32, i32, i32) {
    %c0_i32 = arith.constant 0 : i32
    %c0_i32_0 = arith.constant 0 : i32
    %c0_i32_1 = arith.constant 0 : i32
    return %arg0, %c0_i32, %c0_i32_0 : i32, i32, i32
  }
  func.func @transform_1(%arg0: i32) -> (i32, i32, i32, i32) {
    %c0_i32 = arith.constant 0 : i32
    %c0_i32_0 = arith.constant 0 : i32
    %c0_i32_1 = arith.constant 0 : i32
    %c0_i32_2 = arith.constant 0 : i32
    return %arg0, %c0_i32, %c0_i32_0, %c0_i32_1 : i32, i32, i32, i32
  }
  func.func @transform_2(%arg0: i32) -> (i32, i32, i32, i32) {
    %c0_i32 = arith.constant 0 : i32
    %c0_i32_0 = arith.constant 0 : i32
    %c0_i32_1 = arith.constant 0 : i32
    %c0_i32_2 = arith.constant 0 : i32
    %c0_i32_3 = arith.constant 0 : i32
    return %c0_i32, %c0_i32_0, %c0_i32_1, %c0_i32_2 : i32, i32, i32, i32
  }
  func.func @transform_3(%arg0: i32) -> (i32, i32, i32, i32) {
    %c0_i32 = arith.constant 0 : i32
    %c0_i32_0 = arith.constant 0 : i32
    %c0_i32_1 = arith.constant 0 : i32
    %c0_i32_2 = arith.constant 0 : i32
    %c0_i32_3 = arith.constant 0 : i32
    return %c0_i32, %c0_i32_0, %c0_i32_1, %c0_i32_2 : i32, i32, i32, i32
  }
  func.func @transform_4(%arg0: i32) -> (i32, i32, i32) {
    %c0_i32 = arith.constant 0 : i32
    %c0_i32_0 = arith.constant 0 : i32
    %c0_i32_1 = arith.constant 0 : i32
    %c0_i32_2 = arith.constant 0 : i32
    return %c0_i32, %c0_i32_0, %c0_i32_1 : i32, i32, i32
  }
  func.func @transform_5(%arg0: i32) -> (i32, i32, i32, i32) {
    %c0_i32 = arith.constant 0 : i32
    %c0_i32_0 = arith.constant 0 : i32
    %c0_i32_1 = arith.constant 0 : i32
    %c0_i32_2 = arith.constant 0 : i32
    %c0_i32_3 = arith.constant 0 : i32
    return %c0_i32, %c0_i32_0, %c0_i32_1, %c0_i32_2 : i32, i32, i32, i32
  }
  func.func @transform_6(%arg0: i32) -> (i32, i32, i32) {
    %c0_i32 = arith.constant 0 : i32
    %c0_i32_0 = arith.constant 0 : i32
    %c0_i32_1 = arith.constant 0 : i32
    %c0_i32_2 = arith.constant 0 : i32
    return %c0_i32, %c0_i32_0, %c0_i32_1 : i32, i32, i32
  }
  func.func @transform_7(%arg0: i32) -> (i32, i32, i32) {
    %c0_i32 = arith.constant 0 : i32
    %c0_i32_0 = arith.constant 0 : i32
    %c0_i32_1 = arith.constant 0 : i32
    return %arg0, %c0_i32, %c0_i32_0 : i32, i32, i32
  }
  func.func @transform_8(%arg0: i32) -> (i32, i32, i32) {
    %c0_i32 = arith.constant 0 : i32
    %c0_i32_0 = arith.constant 0 : i32
    %c0_i32_1 = arith.constant 0 : i32
    return %arg0, %c0_i32, %c0_i32_0 : i32, i32, i32
  }
}

</mosaic_0001>

<llo_original>
// kernel: tpu_custom_call.1
$region0: #{tpu_custom_call.1}
  #allocation0 [shape = 'u32[]', space=smem, size = 0x4, offset = 0x4, fixed_abs, tag = 'smem constant byte address 0x4 - core index']
  #allocation1 [shape = 'u32[72,128]{1,0:T(1,128)}', space=vmem, size = 0x9000, scoped, tag = 'internal scratch']
  %s0 = inlined_call_operand.vmem [shape: bf16[2,8,32], index: 0, kind: input, shape index: {}]
  %s1 = inlined_call_operand.vmem [shape: f32[2,4,8,8], index: 1, kind: input, shape index: {}]
  %s2 = inlined_call_operand.vmem [shape: bf16[3,4,32,8], index: 2, kind: input, shape index: {}]
  %s3 = inlined_call_operand.vmem [shape: f32[2,4,1,8], index: 3, kind: input, shape index: {}]
  %s4 = inlined_call_operand.vmem [shape: bf16[4,8,32], index: 4, kind: input, shape index: {}]
  %s5 = inlined_call_operand.vmem [shape: f32[2,4,1,8], index: 5, kind: input, shape index: {}]
  %s6 = inlined_call_operand.vmem [shape: f32[1,1,32], index: 6, kind: input, shape index: {}]
  %s7 = inlined_call_operand.hbm [shape: f32[2,8,32], index: 7, kind: output, shape index: {0}]
  %s8 = inlined_call_operand.hbm [shape: f32[2,8,8], index: 8, kind: output, shape index: {1}]
  %9 = xla_tuple %s7, %s8
  %s10 = sld [smem:[#allocation0]]
  $region69: #{tpu_custom_call.1} parent=0
    _
  %s12 = ssub.s32 1, %s10
  %s13 = scalar_select 0, %s12, %s10
  $region1: #{tpu_custom_call.1} parent=0
    #allocation2 [shape = 'u8[8192]{0}', space=vmem, size = 0x2000, scoped, tag = 'output window, operand 0']
    #allocation3 [shape = 's32[2]{0}', space=sflag, size = 0x8, scoped, tag = 'scoped memory for tpu_custom_call.1']
    #allocation4 [shape = 'u8[8192]{0}', space=vmem, size = 0x2000, scoped, tag = 'output window, operand 1']
    #allocation5 [shape = 's32[2]{0}', space=sflag, size = 0x8, scoped, tag = 'scoped memory for tpu_custom_call.1']
    %14 = vsyncpa [#allocation3], 0
    %s15 = scalar_lea.sflag [#allocation3], 1
    %16 = vsyncpa %s15, 0
    %17 = vsyncpa [#allocation5], 0
    %s18 = scalar_lea.sflag [#allocation5], 1
    %19 = vsyncpa %s18, 0
    loop: start=0, step=1, limit=4
    $region2: #{tpu_custom_call.1} parent=1 // loop_pre_header
      _
    $region3: #{tpu_custom_call.1} parent=1 // loop_header
      %s21 = sphi 0, %s25
      %p22 = scmp.ge.s32.totalorder %s21, 4
      %s31 = sphi 0, %s33
      %s34 = sphi 0, %s31
      %s35 = sphi 0, %s34
      %s51 = sphi 0, %s35
      %s57 = sphi 0, %s59
      %s60 = sphi 0, %s57
      %s61 = sphi 0, %s60
      %s77 = sphi 0, %s61
      %s81 = sphi 0, %s81
      %s83 = sphi 0, %s81
      %s84 = sphi 0, %s83
      %s98 = sphi 0, %s84
      %s102 = sphi 0, %s102
      %s104 = sphi 0, %s102
      %s105 = sphi 0, %s104
      %s119 = sphi 0, %s105
      %s123 = sphi 0, %s123
      %s125 = sphi 0, %s123
      %s126 = sphi 0, %s125
      %s140 = sphi 0, %s126
      %s144 = sphi 0, %s144
      %s146 = sphi 0, %s144
      %s147 = sphi 0, %s146
      %s161 = sphi 0, %s147
      %s165 = sphi 0, %s165
      %s167 = sphi 0, %s165
      %s168 = sphi 0, %s167
      %s182 = sphi 0, %s168
      %s188 = sphi 0, %s190
      %s191 = sphi 0, %s188
      %s192 = sphi 0, %s191
      %s208 = sphi 0, %s192
      %s214 = sphi 0, %s216
      %s217 = sphi 0, %s214
      %s218 = sphi 0, %s217
      %s234 = sphi 0, %s218
    $region4: #{tpu_custom_call.1} parent=1 // loop_header_branch
      %24 = sbr.rel (%p22) target = $region8
    $region5: #{tpu_custom_call.1} parent=1 // loop_body
      %s26 = ssub.s32 %s21, 1
      %s27 = ssub.s32 %s21, 2
      %s28 = sadd.s32 %s21, 1
      %s29 = ssub.s32 %s21, %s28
      %p30 = scmp.eq.s32.totalorder %s29, 0
      %s32 = sadd.s32 %s31, 1
      %s33 = scalar_select %p30, %s31, %s32
      %p36 = pneg %p30
      %p37 = scmp.eq.s32.totalorder %s21, 1
      %p38 = por %p36, %p37
      %p39 = scmp.ne.s32.totalorder %s31, %s34
      %p40 = scmp.eq.s32.totalorder %s21, 0
      %p41 = por %p39, %p40
      %p42 = scmp.ne.s32.totalorder %s31, %s34
      %p43 = scmp.eq.s32.totalorder %s26, 1
      %p44 = por %p42, %p43
      %p45 = scmp.ne.s32.totalorder %s34, %s35
      %p46 = scmp.eq.s32.totalorder %s26, 0
      %p47 = por %p45, %p46
      %p48 = scmp.ne.s32.totalorder %s34, %s35
      %p49 = scmp.eq.s32.totalorder %s27, 1
      %p50 = por %p48, %p49
      %p52 = scmp.ne.s32.totalorder %s35, %s51
      %p53 = scmp.eq.s32.totalorder %s27, 0
      %p54 = por %p52, %p53
      %s55 = ssub.s32 %s21, %s28
      %p56 = scmp.eq.s32.totalorder %s55, 0
      %s58 = sadd.s32 %s57, 1
      %s59 = scalar_select %p56, %s57, %s58
      %p62 = pneg %p56
      %p63 = scmp.eq.s32.totalorder %s21, 1
      %p64 = por %p62, %p63
      %p65 = scmp.ne.s32.totalorder %s57, %s60
      %p66 = scmp.eq.s32.totalorder %s21, 0
      %p67 = por %p65, %p66
      %p68 = scmp.ne.s32.totalorder %s57, %s60
      %p69 = scmp.eq.s32.totalorder %s26, 1
      %p70 = por %p68, %p69
      %p71 = scmp.ne.s32.totalorder %s60, %s61
      %p72 = scmp.eq.s32.totalorder %s26, 0
      %p73 = por %p71, %p72
      %p74 = scmp.ne.s32.totalorder %s60, %s61
      %p75 = scmp.eq.s32.totalorder %s27, 1
      %p76 = por %p74, %p75
      %p78 = scmp.ne.s32.totalorder %s61, %s77
      %p79 = scmp.eq.s32.totalorder %s27, 0
      %p80 = por %p78, %p79
      %s82 = sadd.s32 %s81, 1
      %p85 = scmp.eq.s32.totalorder %s21, 1
      %p86 = scmp.ne.s32.totalorder %s81, %s83
      %p87 = scmp.eq.s32.totalorder %s21, 0
      %p88 = por %p86, %p87
      %p89 = scmp.ne.s32.totalorder %s81, %s83
      %p90 = scmp.eq.s32.totalorder %s26, 1
      %p91 = por %p89, %p90
      %p92 = scmp.ne.s32.totalorder %s83, %s84
      %p93 = scmp.eq.s32.totalorder %s26, 0
      %p94 = por %p92, %p93
      %p95 = scmp.ne.s32.totalorder %s83, %s84
      %p96 = scmp.eq.s32.totalorder %s27, 1
      %p97 = por %p95, %p96
      %p99 = scmp.ne.s32.totalorder %s84, %s98
      %p100 = scmp.eq.s32.totalorder %s27, 0
      %p101 = por %p99, %p100
      %s103 = sadd.s32 %s102, 1
      %p106 = scmp.eq.s32.totalorder %s21, 1
      %p107 = scmp.ne.s32.totalorder %s102, %s104
      %p108 = scmp.eq.s32.totalorder %s21, 0
      %p109 = por %p107, %p108
      %p110 = scmp.ne.s32.totalorder %s102, %s104
      %p111 = scmp.eq.s32.totalorder %s26, 1
      %p112 = por %p110, %p111
      %p113 = scmp.ne.s32.totalorder %s104, %s105
      %p114 = scmp.eq.s32.totalorder %s26, 0
      %p115 = por %p113, %p114
      %p116 = scmp.ne.s32.totalorder %s104, %s105
      %p117 = scmp.eq.s32.totalorder %s27, 1
      %p118 = por %p116, %p117
      %p120 = scmp.ne.s32.totalorder %s105, %s119
      %p121 = scmp.eq.s32.totalorder %s27, 0
      %p122 = por %p120, %p121
      %s124 = sadd.s32 %s123, 1
      %p127 = scmp.eq.s32.totalorder %s21, 1
      %p128 = scmp.ne.s32.totalorder %s123, %s125
      %p129 = scmp.eq.s32.totalorder %s21, 0
      %p130 = por %p128, %p129
      %p131 = scmp.ne.s32.totalorder %s123, %s125
      %p132 = scmp.eq.s32.totalorder %s26, 1
      %p133 = por %p131, %p132
      %p134 = scmp.ne.s32.totalorder %s125, %s126
      %p135 = scmp.eq.s32.totalorder %s26, 0
      %p136 = por %p134, %p135
      %p137 = scmp.ne.s32.totalorder %s125, %s126
      %p138 = scmp.eq.s32.totalorder %s27, 1
      %p139 = por %p137, %p138
      %p141 = scmp.ne.s32.totalorder %s126, %s140
      %p142 = scmp.eq.s32.totalorder %s27, 0
      %p143 = por %p141, %p142
      %s145 = sadd.s32 %s144, 1
      %p148 = scmp.eq.s32.totalorder %s21, 1
      %p149 = scmp.ne.s32.totalorder %s144, %s146
      %p150 = scmp.eq.s32.totalorder %s21, 0
      %p151 = por %p149, %p150
      %p152 = scmp.ne.s32.totalorder %s144, %s146
      %p153 = scmp.eq.s32.totalorder %s26, 1
      %p154 = por %p152, %p153
      %p155 = scmp.ne.s32.totalorder %s146, %s147
      %p156 = scmp.eq.s32.totalorder %s26, 0
      %p157 = por %p155, %p156
      %p158 = scmp.ne.s32.totalorder %s146, %s147
      %p159 = scmp.eq.s32.totalorder %s27, 1
      %p160 = por %p158, %p159
      %p162 = scmp.ne.s32.totalorder %s147, %s161
      %p163 = scmp.eq.s32.totalorder %s27, 0
      %p164 = por %p162, %p163
      %s166 = sadd.s32 %s165, 1
      %p169 = scmp.eq.s32.totalorder %s21, 1
      %p170 = scmp.ne.s32.totalorder %s165, %s167
      %p171 = scmp.eq.s32.totalorder %s21, 0
      %p172 = por %p170, %p171
      %p173 = scmp.ne.s32.totalorder %s165, %s167
      %p174 = scmp.eq.s32.totalorder %s26, 1
      %p175 = por %p173, %p174
      %p176 = scmp.ne.s32.totalorder %s167, %s168
      %p177 = scmp.eq.s32.totalorder %s26, 0
      %p178 = por %p176, %p177
      %p179 = scmp.ne.s32.totalorder %s167, %s168
      %p180 = scmp.eq.s32.totalorder %s27, 1
      %p181 = por %p179, %p180
      %p183 = scmp.ne.s32.totalorder %s168, %s182
      %p184 = scmp.eq.s32.totalorder %s27, 0
      %p185 = por %p183, %p184
      %s186 = ssub.s32 %s21, %s28
      %p187 = scmp.eq.s32.totalorder %s186, 0
      %s189 = sadd.s32 %s188, 1
      %s190 = scalar_select %p187, %s188, %s189
      %p193 = pneg %p187
      %p194 = scmp.eq.s32.totalorder %s21, 1
      %p195 = por %p193, %p194
      %p196 = scmp.ne.s32.totalorder %s188, %s191
      %p197 = scmp.eq.s32.totalorder %s21, 0
      %p198 = por %p196, %p197
      %p199 = scmp.ne.s32.totalorder %s188, %s191
      %p200 = scmp.eq.s32.totalorder %s26, 1
      %p201 = por %p199, %p200
      %p202 = scmp.ne.s32.totalorder %s191, %s192
      %p203 = scmp.eq.s32.totalorder %s26, 0
      %p204 = por %p202, %p203
      %p205 = scmp.ne.s32.totalorder %s191, %s192
      %p206 = scmp.eq.s32.totalorder %s27, 1
      %p207 = por %p205, %p206
      %p209 = scmp.ne.s32.totalorder %s192, %s208
      %p210 = scmp.eq.s32.totalorder %s27, 0
      %p211 = por %p209, %p210
      %s212 = ssub.s32 %s21, %s28
      %p213 = scmp.eq.s32.totalorder %s212, 0
      %s215 = sadd.s32 %s214, 1
      %s216 = scalar_select %p213, %s214, %s215
      %p219 = pneg %p213
      %p220 = scmp.eq.s32.totalorder %s21, 1
      %p221 = por %p219, %p220
      %p222 = scmp.ne.s32.totalorder %s214, %s217
      %p223 = scmp.eq.s32.totalorder %s21, 0
      %p224 = por %p222, %p223
      %p225 = scmp.ne.s32.totalorder %s214, %s217
      %p226 = scmp.eq.s32.totalorder %s26, 1
      %p227 = por %p225, %p226
      %p228 = scmp.ne.s32.totalorder %s217, %s218
      %p229 = scmp.eq.s32.totalorder %s26, 0
      %p230 = por %p228, %p229
      %p231 = scmp.ne.s32.totalorder %s217, %s218
      %p232 = scmp.eq.s32.totalorder %s27, 1
      %p233 = por %p231, %p232
      %p235 = scmp.ne.s32.totalorder %s218, %s234
      %p236 = scmp.eq.s32.totalorder %s27, 0
      %p237 = por %p235, %p236
      %p238 = scmp.le.s32.totalorder 1, %s21
      %p239 = scmp.lt.s32.totalorder %s21, 3
      %p240 = pnand %p238, %p239
      %p241 = pneg %p240
      // Predicated region
      $region9: #{tpu_custom_call.1} parent=5 // pred_check
        _
      $region10: #{tpu_custom_call.1} parent=5 // pred_check_branch
        %243 = sbr.rel (%p240) target = $region12
      $region11: #{tpu_custom_call.1} parent=5 // pred_region
        %s244 = ssub.s32 %s21, 1
        // Predicated region
        $region13: #{tpu_custom_call.1} parent=11 // pred_check
          %p245 = pneg %p94
        $region14: #{tpu_custom_call.1} parent=11 // pred_check_branch
          %247 = sbr.rel (%p245) target = $region16
        $region15: #{tpu_custom_call.1} parent=11 // pred_region
          _
        $region16: #{tpu_custom_call.1} parent=11 // pred_fallthru
          _
        // Predicated region
        $region17: #{tpu_custom_call.1} parent=11 // pred_check
          %p248 = pneg %p115
        $region18: #{tpu_custom_call.1} parent=11 // pred_check_branch
          %250 = sbr.rel (%p248) target = $region20
        $region19: #{tpu_custom_call.1} parent=11 // pred_region
          _
        $region20: #{tpu_custom_call.1} parent=11 // pred_fallthru
          _
        // Predicated region
        $region21: #{tpu_custom_call.1} parent=11 // pred_check
          %p251 = pneg %p136
        $region22: #{tpu_custom_call.1} parent=11 // pred_check_branch
          %253 = sbr.rel (%p251) target = $region24
        $region23: #{tpu_custom_call.1} parent=11 // pred_region
          _
        $region24: #{tpu_custom_call.1} parent=11 // pred_fallthru
          _
        // Predicated region
        $region25: #{tpu_custom_call.1} parent=11 // pred_check
          %p254 = pneg %p157
        $region26: #{tpu_custom_call.1} parent=11 // pred_check_branch
          %256 = sbr.rel (%p254) target = $region28
        $region27: #{tpu_custom_call.1} parent=11 // pred_region
          _
        $region28: #{tpu_custom_call.1} parent=11 // pred_fallthru
          _
        // Predicated region
        $region29: #{tpu_custom_call.1} parent=11 // pred_check
          %p257 = pneg %p178
        $region30: #{tpu_custom_call.1} parent=11 // pred_check_branch
          %259 = sbr.rel (%p257) target = $region32
        $region31: #{tpu_custom_call.1} parent=11 // pred_region
          _
        $region32: #{tpu_custom_call.1} parent=11 // pred_fallthru
          _
      $region12: #{tpu_custom_call.1} parent=5 // pred_fallthru
        _
      %p260 = scmp.lt.s32.totalorder %s21, 2
      // Predicated region
      $region33: #{tpu_custom_call.1} parent=5 // pred_check
        %p261 = pneg %p260
      $region34: #{tpu_custom_call.1} parent=5 // pred_check_branch
        %263 = sbr.rel (%p261) target = $region36
      $region35: #{tpu_custom_call.1} parent=5 // pred_region
        // Predicated region
        $region37: #{tpu_custom_call.1} parent=35 // pred_check
          %p264 = pneg %p41
        $region38: #{tpu_custom_call.1} parent=35 // pred_check_branch
          %266 = sbr.rel (%p264) target = $region40
        $region39: #{tpu_custom_call.1} parent=35 // pred_region
          %p267 = scmp.lt.s32.totalorder %s21, 1
          %s268 = scalar_select %p267, %s21, 1
          %s269 = smul.addr %s268, 4
          %s270 = scalar_lea.vmem %s0, %s269
        $region40: #{tpu_custom_call.1} parent=35 // pred_fallthru
          _
        // Predicated region
        $region41: #{tpu_custom_call.1} parent=35 // pred_check
          %p271 = pneg %p67
        $region42: #{tpu_custom_call.1} parent=35 // pred_check_branch
          %273 = sbr.rel (%p271) target = $region44
        $region43: #{tpu_custom_call.1} parent=35 // pred_region
          %p274 = scmp.lt.s32.totalorder %s21, 1
          %s275 = scalar_select %p274, %s21, 1
          %s276 = smul.addr %s275, 4
          %s277 = smul.addr %s276, 8
          %s278 = scalar_lea.vmem %s1, %s277
        $region44: #{tpu_custom_call.1} parent=35 // pred_fallthru
          _
      $region36: #{tpu_custom_call.1} parent=5 // pred_fallthru
        _
      %p279 = scmp.le.s32.totalorder 1, %s21
      %p280 = scmp.lt.s32.totalorder %s21, 3
      %p281 = pnand %p279, %p280
      %p282 = pneg %p281
      // Predicated region
      $region45: #{tpu_custom_call.1} parent=5 // pred_check
        _
      $region46: #{tpu_custom_call.1} parent=5 // pred_check_branch
        %284 = sbr.rel (%p281) target = $region48
      $region47: #{tpu_custom_call.1} parent=5 // pred_region
        %s285 = ssub.s32 %s21, 1
        %p286 = scmp.lt.s32.totalorder %s26, 1
        %s287 = scalar_select %p286, %s26, 1
        %s288 = smul.addr %s287, 4
        %s289 = scalar_lea.vmem %s0, %s288
        %p290 = pneg %p47
        %p291 = pneg %p44
        %p292 = scmp.lt.s32.totalorder %s26, 1
        %s293 = scalar_select %p292, %s26, 1
        %s294 = smul.addr %s293, 4
        %s295 = smul.addr %s294, 8
        %s296 = scalar_lea.vmem %s1, %s295
        %p297 = pneg %p73
        %p298 = pneg %p70
        %p299 = pneg %p94
        %p300 = pneg %p91
        %p301 = pneg %p115
        %p302 = pneg %p112
        %p303 = pneg %p136
        %p304 = pneg %p133
        %p305 = pneg %p157
        %p306 = pneg %p154
        %p307 = pneg %p178
        %p308 = pneg %p175
        %p309 = pneg %p204
        %p310 = pneg %p201
        %s311 = sand.u32 %s191, 1
        %s312 = scalar_lea.sflag [#allocation3], %s311
        %s313 = sand.u32 %s191, 1
        %s314 = smul.addr %s313, 8
        %s315 = scalar_lea.vmem [#allocation2], %s314
        %p316 = pneg %p230
        %p317 = pneg %p227
        %s318 = sand.u32 %s217, 1
        %s319 = scalar_lea.sflag [#allocation5], %s318
        %s320 = sand.u32 %s217, 1
        %s321 = smul.addr %s320, 8
        %s322 = scalar_lea.vmem [#allocation4], %s321
        %p323 = scmp.lt.s32.totalorder %s26, 1
        %s324 = scalar_select %p323, %s26, 1
        %s325 = smul.addr %s324, 4
        %s326 = scalar_lea.vmem %s0, %s325
        %p327 = scmp.lt.s32.totalorder %s26, 1
        %s328 = scalar_select %p327, %s26, 1
        %s329 = smul.addr %s328, 4
        %s330 = smul.addr %s329, 8
        %s331 = scalar_lea.vmem %s1, %s330
        %v333 = vld [vmem:[%s326] sm:$0xf]
        %v334 = vld [vmem:[%s2] sm:$0xf]
        %v335 = vld [vmem:[%s2 + $0x4] sm:$0xf]
        %v336 = vld [vmem:[%s2 + $0x8] sm:$0xf]
        %v337 = vld [vmem:[%s2 + $0xc] sm:$0xf]
        %v338 = vld [vmem:[%s2 + $0x10] sm:$0xf]
        %v339 = vld [vmem:[%s2 + $0x14] sm:$0xf]
        %v340 = vld [vmem:[%s2 + $0x18] sm:$0xf]
        %v341 = vld [vmem:[%s2 + $0x1c] sm:$0xf]
        %v342 = vld [vmem:[%s2 + $0x20] sm:$0xf]
        %v343 = vld [vmem:[%s2 + $0x24] sm:$0xf]
        %v344 = vld [vmem:[%s2 + $0x28] sm:$0xf]
        %v345 = vld [vmem:[%s2 + $0x2c] sm:$0xf]
        %v346 = vld [vmem:[%s2 + $0x30] sm:$0xf]
        %v347 = vld [vmem:[%s2 + $0x34] sm:$0xf]
        %v348 = vld [vmem:[%s2 + $0x38] sm:$0xf]
        %v349 = vld [vmem:[%s2 + $0x3c] sm:$0xf]
        %s350 = scalar_lea.vmem %s2, 64
        %v351 = vld [vmem:[%s350] sm:$0xf]
        %v352 = vld [vmem:[%s350 + $0x4] sm:$0xf]
        %v353 = vld [vmem:[%s350 + $0x8] sm:$0xf]
        %v354 = vld [vmem:[%s350 + $0xc] sm:$0xf]
        %v355 = vld [vmem:[%s350 + $0x10] sm:$0xf]
        %v356 = vld [vmem:[%s350 + $0x14] sm:$0xf]
        %v357 = vld [vmem:[%s350 + $0x18] sm:$0xf]
        %v358 = vld [vmem:[%s350 + $0x1c] sm:$0xf]
        %v359 = vld [vmem:[%s350 + $0x20] sm:$0xf]
        %v360 = vld [vmem:[%s350 + $0x24] sm:$0xf]
        %v361 = vld [vmem:[%s350 + $0x28] sm:$0xf]
        %v362 = vld [vmem:[%s350 + $0x2c] sm:$0xf]
        %v363 = vld [vmem:[%s350 + $0x30] sm:$0xf]
        %v364 = vld [vmem:[%s350 + $0x34] sm:$0xf]
        %v365 = vld [vmem:[%s350 + $0x38] sm:$0xf]
        %v366 = vld [vmem:[%s350 + $0x3c] sm:$0xf]
        %v371 = vunpack.c.l.b16 %v351
        %v372 = vunpack.c.l.b16 %v352
        %v373 = vunpack.c.l.b16 %v353
        %v374 = vunpack.c.l.b16 %v354
        %v375 = vpack.c.b16 %v372, %v371
        %v376 = vpack.c.b16 %v374, %v373
        %vm379 = vcmask 261120
        %v381 = vsel %vm379, %v333, 0
        %383 = vmatpush.bf16.msra.mxu0 0
        %384 = vmatpush.bf16.msra.mxu0 0
        %385 = vmatpush.bf16.msra.mxu0 0
        %386 = vmatpush.bf16.msra.mxu0 0
        %387 = vmatpush.bf16.msra.mxu0 0
        %388 = vmatpush.bf16.msra.mxu0 0
        %389 = vmatpush.bf16.msra.mxu0 %v376
        %390 = vmatpush.bf16.msra.mxu0 %v375
        %391 = vmatmul.bf16.gmra.mxu0 %v381
        %v392 = vpop.f32.mrf.mxu0
        %v393 = vadd.f32 0.0, %v392
        %v394 = vpop.f32.mrf.mxu0
        %395 = vdwg.mxu0
        %v400 = vunpack.c.l.b16 %v355
        %v401 = vunpack.c.l.b16 %v356
        %v402 = vunpack.c.l.b16 %v357
        %v403 = vunpack.c.l.b16 %v358
        %v404 = vpack.c.b16 %v401, %v400
        %v405 = vpack.c.b16 %v403, %v402
        %408 = vmatpush.bf16.msra.mxu0 0
        %409 = vmatpush.bf16.msra.mxu0 0
        %410 = vmatpush.bf16.msra.mxu0 0
        %411 = vmatpush.bf16.msra.mxu0 0
        %412 = vmatpush.bf16.msra.mxu0 0
        %413 = vmatpush.bf16.msra.mxu0 0
        %414 = vmatpush.bf16.msra.mxu0 %v405
        %415 = vmatpush.bf16.msra.mxu0 %v404
        %416 = vmatmul.bf16.gmra.mxu0 %v381
        %v417 = vpop.f32.mrf.mxu0
        %v418 = vadd.f32 0.0, %v417
        %v419 = vpop.f32.mrf.mxu0
        %420 = vdwg.mxu0
        %v425 = vunpack.c.l.b16 %v359
        %v426 = vunpack.c.l.b16 %v360
        %v427 = vunpack.c.l.b16 %v361
        %v428 = vunpack.c.l.b16 %v362
        %v429 = vpack.c.b16 %v426, %v425
        %v430 = vpack.c.b16 %v428, %v427
        %433 = vmatpush.bf16.msra.mxu0 0
        %434 = vmatpush.bf16.msra.mxu0 0
        %435 = vmatpush.bf16.msra.mxu0 0
        %436 = vmatpush.bf16.msra.mxu0 0
        %437 = vmatpush.bf16.msra.mxu0 0
        %438 = vmatpush.bf16.msra.mxu0 0
        %439 = vmatpush.bf16.msra.mxu0 %v430
        %440 = vmatpush.bf16.msra.mxu0 %v429
        %441 = vmatmul.bf16.gmra.mxu0 %v381
        %v442 = vpop.f32.mrf.mxu0
        %v443 = vadd.f32 0.0, %v442
        %v444 = vpop.f32.mrf.mxu0
        %445 = vdwg.mxu0
        %v450 = vunpack.c.l.b16 %v363
        %v451 = vunpack.c.l.b16 %v364
        %v452 = vunpack.c.l.b16 %v365
        %v453 = vunpack.c.l.b16 %v366
        %v454 = vpack.c.b16 %v451, %v450
        %v455 = vpack.c.b16 %v453, %v452
        %458 = vmatpush.bf16.msra.mxu0 0
        %459 = vmatpush.bf16.msra.mxu0 0
        %460 = vmatpush.bf16.msra.mxu0 0
        %461 = vmatpush.bf16.msra.mxu0 0
        %462 = vmatpush.bf16.msra.mxu0 0
        %463 = vmatpush.bf16.msra.mxu0 0
        %464 = vmatpush.bf16.msra.mxu0 %v455
        %465 = vmatpush.bf16.msra.mxu0 %v454
        %466 = vmatmul.bf16.gmra.mxu0 %v381
        %v467 = vpop.f32.mrf.mxu0
        %v468 = vadd.f32 0.0, %v467
        %v469 = vpop.f32.mrf.mxu0
        %470 = vdwg.mxu0
        %s471 = scalar_lea.vmem %s2, 128
        %v472 = vld [vmem:[%s471] sm:$0xf]
        %v473 = vld [vmem:[%s471 + $0x4] sm:$0xf]
        %v474 = vld [vmem:[%s471 + $0x8] sm:$0xf]
        %v475 = vld [vmem:[%s471 + $0xc] sm:$0xf]
        %v476 = vld [vmem:[%s471 + $0x10] sm:$0xf]
        %v477 = vld [vmem:[%s471 + $0x14] sm:$0xf]
        %v478 = vld [vmem:[%s471 + $0x18] sm:$0xf]
        %v479 = vld [vmem:[%s471 + $0x1c] sm:$0xf]
        %v480 = vld [vmem:[%s471 + $0x20] sm:$0xf]
        %v481 = vld [vmem:[%s471 + $0x24] sm:$0xf]
        %v482 = vld [vmem:[%s471 + $0x28] sm:$0xf]
        %v483 = vld [vmem:[%s471 + $0x2c] sm:$0xf]
        %v484 = vld [vmem:[%s471 + $0x30] sm:$0xf]
        %v485 = vld [vmem:[%s471 + $0x34] sm:$0xf]
        %v486 = vld [vmem:[%s471 + $0x38] sm:$0xf]
        %v487 = vld [vmem:[%s471 + $0x3c] sm:$0xf]
        %v488 = vld [vmem:[%s3] sm:$0x1]
        %v489 = vld [vmem:[%s3 + $0x1] sm:$0x1]
        %v490 = vld [vmem:[%s3 + $0x2] sm:$0x1]
        %v491 = vld [vmem:[%s3 + $0x3] sm:$0x1]
        %v496 = vperm.slane %v488, 0
        %v497 = vperm.slane %v489, 0
        %v498 = vperm.slane %v490, 0
        %v499 = vperm.slane %v491, 0
        %v508 = vunpack.c.l.b16 %v334
        %v509 = vunpack.c.l.b16 %v335
        %v510 = vunpack.c.l.b16 %v336
        %v511 = vunpack.c.l.b16 %v337
        %v512 = vpack.c.b16 %v509, %v508
        %v513 = vpack.c.b16 %v511, %v510
        %516 = vmatpush.bf16.msra.mxu0 0
        %517 = vmatpush.bf16.msra.mxu0 0
        %518 = vmatpush.bf16.msra.mxu0 0
        %519 = vmatpush.bf16.msra.mxu0 0
        %520 = vmatpush.bf16.msra.mxu0 0
        %521 = vmatpush.bf16.msra.mxu0 0
        %522 = vmatpush.bf16.msra.mxu0 %v513
        %523 = vmatpush.bf16.msra.mxu0 %v512
        %524 = vmatmul.bf16.gmra.mxu0 %v381
        %v525 = vpop.f32.mrf.mxu0
        %v526 = vadd.f32 %v496, %v525
        %v527 = vpop.f32.mrf.mxu0
        %528 = vdwg.mxu0
        %v533 = vunpack.c.l.b16 %v338
        %v534 = vunpack.c.l.b16 %v339
        %v535 = vunpack.c.l.b16 %v340
        %v536 = vunpack.c.l.b16 %v341
        %v537 = vpack.c.b16 %v534, %v533
        %v538 = vpack.c.b16 %v536, %v535
        %541 = vmatpush.bf16.msra.mxu0 0
        %542 = vmatpush.bf16.msra.mxu0 0
        %543 = vmatpush.bf16.msra.mxu0 0
        %544 = vmatpush.bf16.msra.mxu0 0
        %545 = vmatpush.bf16.msra.mxu0 0
        %546 = vmatpush.bf16.msra.mxu0 0
        %547 = vmatpush.bf16.msra.mxu0 %v538
        %548 = vmatpush.bf16.msra.mxu0 %v537
        %549 = vmatmul.bf16.gmra.mxu0 %v381
        %v550 = vpop.f32.mrf.mxu0
        %v551 = vadd.f32 %v497, %v550
        %v552 = vpop.f32.mrf.mxu0
        %553 = vdwg.mxu0
        %v558 = vunpack.c.l.b16 %v342
        %v559 = vunpack.c.l.b16 %v343
        %v560 = vunpack.c.l.b16 %v344
        %v561 = vunpack.c.l.b16 %v345
        %v562 = vpack.c.b16 %v559, %v558
        %v563 = vpack.c.b16 %v561, %v560
        %566 = vmatpush.bf16.msra.mxu0 0
        %567 = vmatpush.bf16.msra.mxu0 0
        %568 = vmatpush.bf16.msra.mxu0 0
        %569 = vmatpush.bf16.msra.mxu0 0
        %570 = vmatpush.bf16.msra.mxu0 0
        %571 = vmatpush.bf16.msra.mxu0 0
        %572 = vmatpush.bf16.msra.mxu0 %v563
        %573 = vmatpush.bf16.msra.mxu0 %v562
        %574 = vmatmul.bf16.gmra.mxu0 %v381
        %v575 = vpop.f32.mrf.mxu0
        %v576 = vadd.f32 %v498, %v575
        %v577 = vpop.f32.mrf.mxu0
        %578 = vdwg.mxu0
        %v583 = vunpack.c.l.b16 %v346
        %v584 = vunpack.c.l.b16 %v347
        %v585 = vunpack.c.l.b16 %v348
        %v586 = vunpack.c.l.b16 %v349
        %v587 = vpack.c.b16 %v584, %v583
        %v588 = vpack.c.b16 %v586, %v585
        %591 = vmatpush.bf16.msra.mxu0 0
        %592 = vmatpush.bf16.msra.mxu0 0
        %593 = vmatpush.bf16.msra.mxu0 0
        %594 = vmatpush.bf16.msra.mxu0 0
        %595 = vmatpush.bf16.msra.mxu0 0
        %596 = vmatpush.bf16.msra.mxu0 0
        %597 = vmatpush.bf16.msra.mxu0 %v588
        %598 = vmatpush.bf16.msra.mxu0 %v587
        %599 = vmatmul.bf16.gmra.mxu0 %v381
        %v600 = vpop.f32.mrf.mxu0
        %v601 = vadd.f32 %v499, %v600
        %v602 = vpop.f32.mrf.mxu0
        %603 = vdwg.mxu0
        %s604 = scalar_lea.vmem %s3, 4
        %v605 = vld [vmem:[%s604] sm:$0x1]
        %v606 = vld [vmem:[%s604 + $0x1] sm:$0x1]
        %v607 = vld [vmem:[%s604 + $0x2] sm:$0x1]
        %v608 = vld [vmem:[%s604 + $0x3] sm:$0x1]
        %v613 = vperm.slane %v605, 0
        %v614 = vperm.slane %v606, 0
        %v615 = vperm.slane %v607, 0
        %v616 = vperm.slane %v608, 0
        %v625 = vunpack.c.l.b16 %v472
        %v626 = vunpack.c.l.b16 %v473
        %v627 = vunpack.c.l.b16 %v474
        %v628 = vunpack.c.l.b16 %v475
        %v629 = vpack.c.b16 %v626, %v625
        %v630 = vpack.c.b16 %v628, %v627
        %633 = vmatpush.bf16.msra.mxu0 0
        %634 = vmatpush.bf16.msra.mxu0 0
        %635 = vmatpush.bf16.msra.mxu0 0
        %636 = vmatpush.bf16.msra.mxu0 0
        %637 = vmatpush.bf16.msra.mxu0 0
        %638 = vmatpush.bf16.msra.mxu0 0
        %639 = vmatpush.bf16.msra.mxu0 %v630
        %640 = vmatpush.bf16.msra.mxu0 %v629
        %641 = vmatmul.bf16.gmra.mxu0 %v381
        %v642 = vpop.f32.mrf.mxu0
        %v643 = vadd.f32 %v613, %v642
        %v644 = vpop.f32.mrf.mxu0
        %645 = vdwg.mxu0
        %v650 = vunpack.c.l.b16 %v476
        %v651 = vunpack.c.l.b16 %v477
        %v652 = vunpack.c.l.b16 %v478
        %v653 = vunpack.c.l.b16 %v479
        %v654 = vpack.c.b16 %v651, %v650
        %v655 = vpack.c.b16 %v653, %v652
        %658 = vmatpush.bf16.msra.mxu0 0
        %659 = vmatpush.bf16.msra.mxu0 0
        %660 = vmatpush.bf16.msra.mxu0 0
        %661 = vmatpush.bf16.msra.mxu0 0
        %662 = vmatpush.bf16.msra.mxu0 0
        %663 = vmatpush.bf16.msra.mxu0 0
        %664 = vmatpush.bf16.msra.mxu0 %v655
        %665 = vmatpush.bf16.msra.mxu0 %v654
        %666 = vmatmul.bf16.gmra.mxu0 %v381
        %v667 = vpop.f32.mrf.mxu0
        %v668 = vadd.f32 %v614, %v667
        %v669 = vpop.f32.mrf.mxu0
        %670 = vdwg.mxu0
        %v675 = vunpack.c.l.b16 %v480
        %v676 = vunpack.c.l.b16 %v481
        %v677 = vunpack.c.l.b16 %v482
        %v678 = vunpack.c.l.b16 %v483
        %v679 = vpack.c.b16 %v676, %v675
        %v680 = vpack.c.b16 %v678, %v677
        %683 = vmatpush.bf16.msra.mxu0 0
        %684 = vmatpush.bf16.msra.mxu0 0
        %685 = vmatpush.bf16.msra.mxu0 0
        %686 = vmatpush.bf16.msra.mxu0 0
        %687 = vmatpush.bf16.msra.mxu0 0
        %688 = vmatpush.bf16.msra.mxu0 0
        %689 = vmatpush.bf16.msra.mxu0 %v680
        %690 = vmatpush.bf16.msra.mxu0 %v679
        %691 = vmatmul.bf16.gmra.mxu0 %v381
        %v692 = vpop.f32.mrf.mxu0
        %v693 = vadd.f32 %v615, %v692
        %v694 = vpop.f32.mrf.mxu0
        %695 = vdwg.mxu0
        %v700 = vunpack.c.l.b16 %v484
        %v701 = vunpack.c.l.b16 %v485
        %v702 = vunpack.c.l.b16 %v486
        %v703 = vunpack.c.l.b16 %v487
        %v704 = vpack.c.b16 %v701, %v700
        %v705 = vpack.c.b16 %v703, %v702
        %708 = vmatpush.bf16.msra.mxu0 0
        %709 = vmatpush.bf16.msra.mxu0 0
        %710 = vmatpush.bf16.msra.mxu0 0
        %711 = vmatpush.bf16.msra.mxu0 0
        %712 = vmatpush.bf16.msra.mxu0 0
        %713 = vmatpush.bf16.msra.mxu0 0
        %714 = vmatpush.bf16.msra.mxu0 %v705
        %715 = vmatpush.bf16.msra.mxu0 %v704
        %716 = vmatmul.bf16.gmra.mxu0 %v381
        %v717 = vpop.f32.mrf.mxu0
        %v718 = vadd.f32 %v616, %v717
        %v719 = vpop.f32.mrf.mxu0
        %720 = vdwg.mxu0
        %v721 = vpack.c.bf16 %v526, %v526
        %v722 = vpack.c.bf16 %v551, %v551
        %v723 = vpack.c.bf16 %v576, %v576
        %v724 = vpack.c.bf16 %v601, %v601
        %v725 = vpack.c.bf16 %v393, %v393
        %v726 = vpack.c.bf16 %v418, %v418
        %v727 = vpack.c.bf16 %v443, %v443
        %v728 = vpack.c.bf16 %v468, %v468
        %v729 = vld [vmem:[%s331] sm:$0xff]
        %v730 = vld [vmem:[%s331 + $0x8] sm:$0xff]
        %v731 = vld [vmem:[%s331 + $0x10] sm:$0xff]
        %v732 = vld [vmem:[%s331 + $0x18] sm:$0xff]
        %vm733 = vcmask 64512
        %v735 = vsel %vm733, %v721, 0
        %v738 = vsel %vm733, %v725, 0
        %740 = vmatpush.bf16.xpose.msra.mxu0 0
        %741 = vmatpush.bf16.xpose.msra.mxu0 0
        %742 = vmatpush.bf16.xpose.msra.mxu0 0
        %743 = vmatpush.bf16.xpose.msra.mxu0 0
        %744 = vmatpush.bf16.xpose.msra.mxu0 0
        %745 = vmatpush.bf16.xpose.msra.mxu0 0
        %746 = vmatpush.bf16.xpose.msra.mxu0 0
        %747 = vmatpush.bf16.xpose.msra.mxu0 %v738
        %748 = vmatmul.bf16.gmra.mxu0 %v735
        %v749 = vpop.f32.mrf.mxu0
        %v750 = vadd.f32 %v729, %v749
        %v751 = vpop.f32.mrf.mxu0
        %752 = vdwg.mxu0
        %v754 = vsel %vm733, %v722, 0
        %v757 = vsel %vm733, %v726, 0
        %759 = vmatpush.bf16.xpose.msra.mxu0 0
        %760 = vmatpush.bf16.xpose.msra.mxu0 0
        %761 = vmatpush.bf16.xpose.msra.mxu0 0
        %762 = vmatpush.bf16.xpose.msra.mxu0 0
        %763 = vmatpush.bf16.xpose.msra.mxu0 0
        %764 = vmatpush.bf16.xpose.msra.mxu0 0
        %765 = vmatpush.bf16.xpose.msra.mxu0 0
        %766 = vmatpush.bf16.xpose.msra.mxu0 %v757
        %767 = vmatmul.bf16.gmra.mxu0 %v754
        %v768 = vpop.f32.mrf.mxu0
        %v769 = vadd.f32 %v730, %v768
        %v770 = vpop.f32.mrf.mxu0
        %771 = vdwg.mxu0
        %v773 = vsel %vm733, %v723, 0
        %v776 = vsel %vm733, %v727, 0
        %778 = vmatpush.bf16.xpose.msra.mxu0 0
        %779 = vmatpush.bf16.xpose.msra.mxu0 0
        %780 = vmatpush.bf16.xpose.msra.mxu0 0
        %781 = vmatpush.bf16.xpose.msra.mxu0 0
        %782 = vmatpush.bf16.xpose.msra.mxu0 0
        %783 = vmatpush.bf16.xpose.msra.mxu0 0
        %784 = vmatpush.bf16.xpose.msra.mxu0 0
        %785 = vmatpush.bf16.xpose.msra.mxu0 %v776
        %786 = vmatmul.bf16.gmra.mxu0 %v773
        %v787 = vpop.f32.mrf.mxu0
        %v788 = vadd.f32 %v731, %v787
        %v789 = vpop.f32.mrf.mxu0
        %790 = vdwg.mxu0
        %v792 = vsel %vm733, %v724, 0
        %v795 = vsel %vm733, %v728, 0
        %797 = vmatpush.bf16.xpose.msra.mxu0 0
        %798 = vmatpush.bf16.xpose.msra.mxu0 0
        %799 = vmatpush.bf16.xpose.msra.mxu0 0
        %800 = vmatpush.bf16.xpose.msra.mxu0 0
        %801 = vmatpush.bf16.xpose.msra.mxu0 0
        %802 = vmatpush.bf16.xpose.msra.mxu0 0
        %803 = vmatpush.bf16.xpose.msra.mxu0 0
        %804 = vmatpush.bf16.xpose.msra.mxu0 %v795
        %805 = vmatmul.bf16.gmra.mxu0 %v792
        %v806 = vpop.f32.mrf.mxu0
        %v807 = vadd.f32 %v732, %v806
        %v808 = vpop.f32.mrf.mxu0
        %809 = vdwg.mxu0
        %v810 = vsel %vm733, %v750, -inf
        %811 = vmax.xlane.f32.xlu0 %v810
        %v812 = vpop.xlane.xlu0 %811
        %v813 = vsel %vm733, %v769, -inf
        %814 = vmax.xlane.f32.xlu0 %v813
        %v815 = vpop.xlane.xlu0 %814
        %v816 = vsel %vm733, %v788, -inf
        %817 = vmax.xlane.f32.xlu0 %v816
        %v818 = vpop.xlane.xlu0 %817
        %v819 = vsel %vm733, %v807, -inf
        %820 = vmax.xlane.f32.xlu0 %v819
        %v821 = vpop.xlane.xlu0 %820
        %v822 = vsub.f32 %v750, %v812
        %v823 = vsub.f32 %v769, %v815
        %v824 = vsub.f32 %v788, %v818
        %v825 = vsub.f32 %v807, %v821
        %v826 = vmul.f32 %v822, 1.442695
        %v827 = vpow.pop %v826
        %v828 = vmul.f32 %v823, 1.442695
        %v829 = vpow.pop %v828
        %v830 = vmul.f32 %v824, 1.442695
        %v831 = vpow.pop %v830
        %v832 = vmul.f32 %v825, 1.442695
        %v833 = vpow.pop %v832
        %v834 = vsel %vm733, %v827, 0.0
        %835 = vadd.xlane.f32.xlu0 %v834
        %v836 = vpop.xlane.xlu0 %835
        %v837 = vsel %vm733, %v829, 0.0
        %838 = vadd.xlane.f32.xlu0 %v837
        %v839 = vpop.xlane.xlu0 %838
        %v840 = vsel %vm733, %v831, 0.0
        %841 = vadd.xlane.f32.xlu0 %v840
        %v842 = vpop.xlane.xlu0 %841
        %v843 = vsel %vm733, %v833, 0.0
        %844 = vadd.xlane.f32.xlu0 %v843
        %v845 = vpop.xlane.xlu0 %844
        %v846 = vrcp.pop %v836
        %v847 = vrcp.pop %v839
        %v848 = vrcp.pop %v842
        %v849 = vrcp.pop %v845
        %v850 = vmul.f32 %v827, %v846
        %v851 = vmul.f32 %v829, %v847
        %v852 = vmul.f32 %v831, %v848
        %v853 = vmul.f32 %v833, %v849
        %v854 = vsel %vm733, %v850, 0.0
        %v855 = vsel %vm733, %v851, 0.0
        %v856 = vadd.f32 %v854, %v855
        %v857 = vsel %vm733, %v852, 0.0
        %v858 = vadd.f32 %v856, %v857
        %v859 = vsel %vm733, %v853, 0.0
        %v860 = vadd.f32 %v858, %v859
        %v861 = vmul.f32 %v860, 0.25
        %862 = vst.msk [vmem:[%s322] sm:$0xff] %vm733, %v861
        %v863 = vpack.c.bf16 %v850, %v850
        %v864 = vpack.c.bf16 %v851, %v851
        %v865 = vpack.c.bf16 %v852, %v852
        %v866 = vpack.c.bf16 %v853, %v853
        %v867 = vpack.c.bf16 %v643, %v643
        %v868 = vpack.c.bf16 %v668, %v668
        %v869 = vpack.c.bf16 %v693, %v693
        %v870 = vpack.c.bf16 %v718, %v718
        %v872 = vsel %vm733, %v863, 0
        %vm874 = vcmask 1043456
        %v876 = vsel %vm874, %v867, 0
        %878 = vmatpush.bf16.msra.mxu0 0
        %879 = vmatpush.bf16.msra.mxu0 0
        %880 = vmatpush.bf16.msra.mxu0 0
        %881 = vmatpush.bf16.msra.mxu0 0
        %882 = vmatpush.bf16.msra.mxu0 0
        %883 = vmatpush.bf16.msra.mxu0 0
        %884 = vmatpush.bf16.msra.mxu0 0
        %885 = vmatpush.bf16.msra.mxu0 %v876
        %886 = vmatmul.bf16.gmra.mxu0 %v872
        %v887 = vpop.f32.mrf.mxu0
        %v888 = vadd.f32 0.0, %v887
        %v889 = vpop.f32.mrf.mxu0
        %890 = vdwg.mxu0
        %v892 = vsel %vm733, %v864, 0
        %v895 = vsel %vm874, %v868, 0
        %897 = vmatpush.bf16.msra.mxu0 0
        %898 = vmatpush.bf16.msra.mxu0 0
        %899 = vmatpush.bf16.msra.mxu0 0
        %900 = vmatpush.bf16.msra.mxu0 0
        %901 = vmatpush.bf16.msra.mxu0 0
        %902 = vmatpush.bf16.msra.mxu0 0
        %903 = vmatpush.bf16.msra.mxu0 0
        %904 = vmatpush.bf16.msra.mxu0 %v895
        %905 = vmatmul.bf16.gmra.mxu0 %v892
        %v906 = vpop.f32.mrf.mxu0
        %v907 = vadd.f32 0.0, %v906
        %v908 = vpop.f32.mrf.mxu0
        %909 = vdwg.mxu0
        %v911 = vsel %vm733, %v865, 0
        %v914 = vsel %vm874, %v869, 0
        %916 = vmatpush.bf16.msra.mxu0 0
        %917 = vmatpush.bf16.msra.mxu0 0
        %918 = vmatpush.bf16.msra.mxu0 0
        %919 = vmatpush.bf16.msra.mxu0 0
        %920 = vmatpush.bf16.msra.mxu0 0
        %921 = vmatpush.bf16.msra.mxu0 0
        %922 = vmatpush.bf16.msra.mxu0 0
        %923 = vmatpush.bf16.msra.mxu0 %v914
        %924 = vmatmul.bf16.gmra.mxu0 %v911
        %v925 = vpop.f32.mrf.mxu0
        %v926 = vadd.f32 0.0, %v925
        %v927 = vpop.f32.mrf.mxu0
        %928 = vdwg.mxu0
        %v930 = vsel %vm733, %v866, 0
        %v933 = vsel %vm874, %v870, 0
        %935 = vmatpush.bf16.msra.mxu0 0
        %936 = vmatpush.bf16.msra.mxu0 0
        %937 = vmatpush.bf16.msra.mxu0 0
        %938 = vmatpush.bf16.msra.mxu0 0
        %939 = vmatpush.bf16.msra.mxu0 0
        %940 = vmatpush.bf16.msra.mxu0 0
        %941 = vmatpush.bf16.msra.mxu0 0
        %942 = vmatpush.bf16.msra.mxu0 %v933
        %943 = vmatmul.bf16.gmra.mxu0 %v930
        %v944 = vpop.f32.mrf.mxu0
        %v945 = vadd.f32 0.0, %v944
        %v946 = vpop.f32.mrf.mxu0
        %947 = vdwg.mxu0
        %v948 = vsel %vm733, %v888, 0.0
        %949 = vadd.xlane.f32.xlu0 %v948
        %v950 = vpop.xlane.xlu0 %949
        %v951 = vsel %vm733, %v907, 0.0
        %952 = vadd.xlane.f32.xlu0 %v951
        %v953 = vpop.xlane.xlu0 %952
        %v954 = vsel %vm733, %v926, 0.0
        %955 = vadd.xlane.f32.xlu0 %v954
        %v956 = vpop.xlane.xlu0 %955
        %v957 = vsel %vm733, %v945, 0.0
        %958 = vadd.xlane.f32.xlu0 %v957
        %v959 = vpop.xlane.xlu0 %958
        %v960 = vadd.f32 %v950, %v953
        %v961 = vadd.f32 %v960, %v956
        %v962 = vadd.f32 %v961, %v959
        %v963 = vmul.f32 %v962, 0.03125
        %v964 = vsub.f32 %v888, %v963
        %v965 = vsub.f32 %v907, %v963
        %v966 = vsub.f32 %v926, %v963
        %v967 = vsub.f32 %v945, %v963
        %v968 = vmul.f32 %v964, %v964
        %v969 = vmul.f32 %v965, %v965
        %v970 = vmul.f32 %v966, %v966
        %v971 = vmul.f32 %v967, %v967
        %v972 = vsel %vm733, %v968, 0.0
        %973 = vadd.xlane.f32.xlu0 %v972
        %v974 = vpop.xlane.xlu0 %973
        %v975 = vsel %vm733, %v969, 0.0
        %976 = vadd.xlane.f32.xlu0 %v975
        %v977 = vpop.xlane.xlu0 %976
        %v978 = vsel %vm733, %v970, 0.0
        %979 = vadd.xlane.f32.xlu0 %v978
        %v980 = vpop.xlane.xlu0 %979
        %v981 = vsel %vm733, %v971, 0.0
        %982 = vadd.xlane.f32.xlu0 %v981
        %v983 = vpop.xlane.xlu0 %982
        %v984 = vadd.f32 %v974, %v977
        %v985 = vadd.f32 %v984, %v980
        %v986 = vadd.f32 %v985, %v983
        %v987 = vmul.f32 %v986, 0.03125
        %v988 = vadd.f32 %v987, 1e-05
        %v989 = vrsqrt.pop %v988
        %v990 = vmul.f32 %v989, %v988
        %v991 = vmul.f32 %v990, %v989
        %v992 = vmul.f32 0.5, %v991
        %v993 = vsub.f32 1.5, %v992
        %v994 = vmul.f32 %v989, %v993
        %vm995 = vweird.f32 %v988
        %vm996 = vweird.f32 %v989
        %vm997 = vmor %vm995, %vm996
        %v998 = vsel %vm997, %v989, %v994
        %v999 = vmul.f32 %v964, %v998
        %v1000 = vmul.f32 %v965, %v998
        %v1001 = vmul.f32 %v966, %v998
        %v1002 = vmul.f32 %v967, %v998
        %v1003 = vld [vmem:[%s5] sm:$0x1]
        %v1004 = vld [vmem:[%s5 + $0x1] sm:$0x1]
        %v1005 = vld [vmem:[%s5 + $0x2] sm:$0x1]
        %v1006 = vld [vmem:[%s5 + $0x3] sm:$0x1]
        %v1011 = vperm.slane %v1003, 0
        %v1012 = vperm.slane %v1004, 0
        %v1013 = vperm.slane %v1005, 0
        %v1014 = vperm.slane %v1006, 0
        %v1019 = vmul.f32 %v999, %v1011
        %v1020 = vmul.f32 %v1000, %v1012
        %v1021 = vmul.f32 %v1001, %v1013
        %v1022 = vmul.f32 %v1002, %v1014
        %s1023 = scalar_lea.vmem %s5, 4
        %v1024 = vld [vmem:[%s1023] sm:$0x1]
        %v1025 = vld [vmem:[%s1023 + $0x1] sm:$0x1]
        %v1026 = vld [vmem:[%s1023 + $0x2] sm:$0x1]
        %v1027 = vld [vmem:[%s1023 + $0x3] sm:$0x1]
        %v1032 = vperm.slane %v1024, 0
        %v1033 = vperm.slane %v1025, 0
        %v1034 = vperm.slane %v1026, 0
        %v1035 = vperm.slane %v1027, 0
        %v1040 = vadd.f32 %v1019, %v1032
        %v1041 = vadd.f32 %v1020, %v1033
        %v1042 = vadd.f32 %v1021, %v1034
        %v1043 = vadd.f32 %v1022, %v1035
        %v1044 = vpack.c.bf16 %v1040, %v1040
        %v1045 = vpack.c.bf16 %v1041, %v1041
        %v1046 = vpack.c.bf16 %v1042, %v1042
        %v1047 = vpack.c.bf16 %v1043, %v1043
        %v1048 = vld [vmem:[%s4] sm:$0xf]
        %v1049 = vld [vmem:[%s4 + $0x4] sm:$0xf]
        %v1050 = vld [vmem:[%s4 + $0x8] sm:$0xf]
        %v1051 = vld [vmem:[%s4 + $0xc] sm:$0xf]
        %v1053 = vsel %vm733, %v1044, 0
        %v1056 = vsel %vm874, %v1048, 0
        %1058 = vmatpush.bf16.msra.mxu0 0
        %1059 = vmatpush.bf16.msra.mxu0 0
        %1060 = vmatpush.bf16.msra.mxu0 0
        %1061 = vmatpush.bf16.msra.mxu0 0
        %1062 = vmatpush.bf16.msra.mxu0 0
        %1063 = vmatpush.bf16.msra.mxu0 0
        %1064 = vmatpush.bf16.msra.mxu0 0
        %1065 = vmatpush.bf16.msra.mxu0 %v1056
        %1066 = vmatmul.bf16.gmra.mxu0 %v1053
        %v1067 = vpop.f32.mrf.mxu0
        %v1068 = vadd.f32 0.0, %v1067
        %v1069 = vpop.f32.mrf.mxu0
        %1070 = vdwg.mxu0
        %v1072 = vsel %vm733, %v1045, 0
        %v1075 = vsel %vm874, %v1049, 0
        %1077 = vmatpush.bf16.msra.mxu0 0
        %1078 = vmatpush.bf16.msra.mxu0 0
        %1079 = vmatpush.bf16.msra.mxu0 0
        %1080 = vmatpush.bf16.msra.mxu0 0
        %1081 = vmatpush.bf16.msra.mxu0 0
        %1082 = vmatpush.bf16.msra.mxu0 0
        %1083 = vmatpush.bf16.msra.mxu0 0
        %1084 = vmatpush.bf16.msra.mxu0 %v1075
        %1085 = vmatmul.bf16.gmra.mxu0 %v1072
        %v1086 = vpop.f32.mrf.mxu0
        %v1087 = vadd.f32 0.0, %v1086
        %v1088 = vpop.f32.mrf.mxu0
        %1089 = vdwg.mxu0
        %v1091 = vsel %vm733, %v1046, 0
        %v1094 = vsel %vm874, %v1050, 0
        %1096 = vmatpush.bf16.msra.mxu0 0
        %1097 = vmatpush.bf16.msra.mxu0 0
        %1098 = vmatpush.bf16.msra.mxu0 0
        %1099 = vmatpush.bf16.msra.mxu0 0
        %1100 = vmatpush.bf16.msra.mxu0 0
        %1101 = vmatpush.bf16.msra.mxu0 0
        %1102 = vmatpush.bf16.msra.mxu0 0
        %1103 = vmatpush.bf16.msra.mxu0 %v1094
        %1104 = vmatmul.bf16.gmra.mxu0 %v1091
        %v1105 = vpop.f32.mrf.mxu0
        %v1106 = vadd.f32 0.0, %v1105
        %v1107 = vpop.f32.mrf.mxu0
        %1108 = vdwg.mxu0
        %v1110 = vsel %vm733, %v1047, 0
        %v1113 = vsel %vm874, %v1051, 0
        %1115 = vmatpush.bf16.msra.mxu0 0
        %1116 = vmatpush.bf16.msra.mxu0 0
        %1117 = vmatpush.bf16.msra.mxu0 0
        %1118 = vmatpush.bf16.msra.mxu0 0
        %1119 = vmatpush.bf16.msra.mxu0 0
        %1120 = vmatpush.bf16.msra.mxu0 0
        %1121 = vmatpush.bf16.msra.mxu0 0
        %1122 = vmatpush.bf16.msra.mxu0 %v1113
        %1123 = vmatmul.bf16.gmra.mxu0 %v1110
        %v1124 = vpop.f32.mrf.mxu0
        %v1125 = vadd.f32 0.0, %v1124
        %v1126 = vpop.f32.mrf.mxu0
        %1127 = vdwg.mxu0
        %v1128 = vsel %vm379, %v1068, 0.0
        %v1129 = vsel %vm379, %v1087, 0.0
        %v1130 = vadd.f32 %v1128, %v1129
        %v1131 = vsel %vm379, %v1106, 0.0
        %v1132 = vadd.f32 %v1130, %v1131
        %v1133 = vsel %vm379, %v1125, 0.0
        %v1134 = vadd.f32 %v1132, %v1133
        %v1135 = vld [vmem:[%s6] sm:$0x1]
        %v1137 = vperm.slane %v1135, 0
        %v1139 = vadd.f32 %v1134, %v1137
        %1140 = vst.msk [vmem:[%s315] sm:$0xff] %vm379, %v1139
        %s1141 = sand.u32 %s191, 1
        %s1142 = scalar_lea.sflag [#allocation3], %s1141
        %s1143 = sand.u32 %s191, 1
        %s1144 = smul.addr %s1143, 8
        %s1145 = scalar_lea.vmem [#allocation2], %s1144
        %s1146 = sand.u32 %s217, 1
        %s1147 = scalar_lea.sflag [#allocation5], %s1146
        %s1148 = sand.u32 %s217, 1
        %s1149 = smul.addr %s1148, 8
        %s1150 = scalar_lea.vmem [#allocation4], %s1149
        // Predicated region
        $region49: #{tpu_custom_call.1} parent=47 // pred_check
          %p1151 = pneg %p201
        $region50: #{tpu_custom_call.1} parent=47 // pred_check_branch
          %1153 = sbr.rel (%p1151) target = $region52
        $region51: #{tpu_custom_call.1} parent=47 // pred_region
          %1155 = vsyncadd %s1142, 0
          %s1156 = smul.addr %s26, 8
          %s1157 = scalar_lea.hbm %s7, %s1156
          %s1159 = sshll.u32 %s1145, 4
          %s1160 = int_to_ptr.vmem [resolvable:$true] %s1159
          %s1161 = sshll.u32 %s1157, 4
          %s1162 = int_to_ptr.hbm [resolvable:$true] %s1161
          %1164 = dma.vmem_to_hbm [thread:$0]  %s1160, 128, %s1162, %s1142
        $region52: #{tpu_custom_call.1} parent=47 // pred_fallthru
          _
        // Predicated region
        $region53: #{tpu_custom_call.1} parent=47 // pred_check
          %p1165 = pneg %p227
        $region54: #{tpu_custom_call.1} parent=47 // pred_check_branch
          %1167 = sbr.rel (%p1165) target = $region56
        $region55: #{tpu_custom_call.1} parent=47 // pred_region
          %1169 = vsyncadd %s1147, 0
          %s1170 = smul.addr %s26, 8
          %s1171 = scalar_lea.hbm %s8, %s1170
          %s1173 = sshll.u32 %s1150, 4
          %s1174 = int_to_ptr.vmem [resolvable:$true] %s1173
          %s1175 = sshll.u32 %s1171, 4
          %s1176 = int_to_ptr.hbm [resolvable:$true] %s1175
          %1178 = dma.vmem_to_hbm [thread:$0]  %s1174, 128, %s1176, %s1147
        $region56: #{tpu_custom_call.1} parent=47 // pred_fallthru
          _
      $region48: #{tpu_custom_call.1} parent=5 // pred_fallthru
        _
      %p1179 = scmp.le.s32.totalorder 2, %s21
      // Predicated region
      $region57: #{tpu_custom_call.1} parent=5 // pred_check
        %p1180 = pneg %p1179
      $region58: #{tpu_custom_call.1} parent=5 // pred_check_branch
        %1182 = sbr.rel (%p1180) target = $region60
      $region59: #{tpu_custom_call.1} parent=5 // pred_region
        %s1183 = ssub.s32 %s21, 2
        // Predicated region
        $region61: #{tpu_custom_call.1} parent=59 // pred_check
          %p1184 = pneg %p207
        $region62: #{tpu_custom_call.1} parent=59 // pred_check_branch
          %1186 = sbr.rel (%p1184) target = $region64
        $region63: #{tpu_custom_call.1} parent=59 // pred_region
          %s1187 = sand.u32 %s192, 1
          %s1188 = scalar_lea.sflag [#allocation3], %s1187
          %s1189 = sand.u32 %s192, 1
          %s1190 = smul.addr %s1189, 8
          %s1191 = scalar_lea.vmem [#allocation2], %s1190
          %1193 = dma.done %s1188, 128
        $region64: #{tpu_custom_call.1} parent=59 // pred_fallthru
          _
        // Predicated region
        $region65: #{tpu_custom_call.1} parent=59 // pred_check
          %p1194 = pneg %p233
        $region66: #{tpu_custom_call.1} parent=59 // pred_check_branch
          %1196 = sbr.rel (%p1194) target = $region68
        $region67: #{tpu_custom_call.1} parent=59 // pred_region
          %s1197 = sand.u32 %s218, 1
          %s1198 = scalar_lea.sflag [#allocation5], %s1197
          %s1199 = sand.u32 %s218, 1
          %s1200 = smul.addr %s1199, 8
          %s1201 = scalar_lea.vmem [#allocation4], %s1200
          %1203 = dma.done %s1198, 128
        $region68: #{tpu_custom_call.1} parent=59 // pred_fallthru
          _
      $region60: #{tpu_custom_call.1} parent=5 // pred_fallthru
        _
    $region6: #{tpu_custom_call.1} parent=1 // loop_footer
      %s25 = sadd.s32 1, %s21
    $region7: #{tpu_custom_call.1} parent=1 // loop_footer_branch
      %20 = sbr.rel target = $region3
    $region8: #{tpu_custom_call.1} parent=1 // loop_exit
      _
    %1204 = vsyncpa [#allocation3], 1
    %s1205 = scalar_lea.sflag [#allocation3], 1
    %1206 = vsyncpa %s1205, 1
    %1207 = vsyncpa [#allocation5], 1
    %s1208 = scalar_lea.sflag [#allocation5], 1
    %1209 = vsyncpa %s1208, 1

</llo_original>
